<compile_context>
chip_gen: v5e
topology: v5e:2x2
jax: 0.10.0
libtpu: 0.0.40
codegen_flags: <defaults>
</compile_context>

<pallas_src>
import jax
import jax.numpy as jnp
from jax.experimental import pallas as pl
from jax.experimental.pallas import tpu as pltpu


# ---------------------------------------------------------------------------
# Host-side helpers (built ONCE per weight set, outside the forward path).
# ---------------------------------------------------------------------------
def _interp_matrix(nout, nin):
    """Bilinear align_corners=True interpolation matrix (nout, nin)."""
    i = jnp.arange(nout, dtype=jnp.float32)
    if nout > 1:
        src = i * (nin - 1) / (nout - 1)
    else:
        src = jnp.zeros_like(i)
    lo = jnp.clip(jnp.floor(src).astype(jnp.int32), 0, nin - 1)
    hi = jnp.clip(lo + 1, 0, nin - 1)
    frac = src - lo.astype(jnp.float32)
    rows = jnp.arange(nout)
    m = jnp.zeros((nout, nin), jnp.float32)
    m = m.at[rows, lo].add(1.0 - frac)
    m = m.at[rows, hi].add(frac)
    return m


def _band_weights(w_hwio, W):
    """Block-Toeplitz band matrices M (3, W*Cin, W*Cout) such that

        out[h, w*Cout + d] = sum_kh  xrow_pad[h + kh, :] @ M[kh]

    implements a 3x3 SAME conv (padding=1) with the W padding absorbed into M."""
    KH, KW, Cin, Cout = w_hwio.shape
    q = jnp.arange(W)[None, :, None]
    wcol = jnp.arange(W)[None, None, :]
    kw = jnp.arange(KW)[:, None, None]
    E = (q == wcol + kw - (KW // 2)).astype(jnp.float32)      # (KW, W, W)
    M = jnp.einsum('bqw,abcd->aqcwd', E, w_hwio)              # (KH, W, Cin, W, Cout)
    return M.reshape(KH, W * Cin, W * Cout)


def prepare_unet_up_params(w1, b1, w2, b2, c_up, h_in, w_in):
    """Fused operators for unet_up_forward.  Hoisted out of the forward path so the
    band-matrix einsums / kron run once per weight set, not once per call."""
    H, W = 2 * h_in, 2 * w_in
    A = _interp_matrix(H, h_in)
    A_pad = jnp.pad(A, ((1, 1), (0, 0)))                           # (H+2, h_in), zero halo rows
    B = _interp_matrix(W, w_in)
    BkT = jnp.kron(B.T, jnp.eye(c_up, dtype=jnp.float32))          # (w_in*c_up, W*c_up)

    # Band weights; w1 split so the channel concat never materializes, and the
    # column-upsample operator folded into the up-channel half.
    M1a = _band_weights(w1[:, :, :c_up, :], W)                     # (3, W*c_up,   W*cout)
    M1b = _band_weights(w1[:, :, c_up:, :], W)                     # (3, W*c_skip, W*cout)
    M1a_f = jnp.einsum('uk,akd->aud', BkT, M1a)                    # (3, w_in*c_up, W*cout)
    M1 = jnp.concatenate([M1a_f, M1b], axis=1).astype(jnp.bfloat16)
    M2 = _band_weights(w2, W).astype(jnp.bfloat16)                 # (3, W*cout, W*cout)
    b1r = jnp.tile(b1, W)[None, :].astype(jnp.float32)             # (1, W*cout)
    b2r = jnp.tile(b2, W)[None, :].astype(jnp.float32)
    return {"A_pad": A_pad, "M1": M1, "M2": M2, "b1": b1r, "b2": b2r}


def _pick_nb(n):
    """Items per grid step: bigger M per MXU push, but keep >= 2 grid steps when
    possible so both v7x TensorCores get work."""
    for nb in (8, 4, 2):
        if n % nb == 0 and n // nb >= 2:
            return nb
    return 1


# ---------------------------------------------------------------------------
# Fused Pallas kernel: (folded upsample+concat) -> conv1+ReLU -> conv2+ReLU.
# One grid step per NB batch items; all intermediates live in VMEM/vregs.
# ---------------------------------------------------------------------------
def _unet_up_kernel(lhs1_ref, m1_ref, m2_ref, b1_ref, b2_ref, o_ref, h1p_ref):
    NB, Hp2, _ = lhs1_ref.shape
    H = Hp2 - 2
    WCo = o_ref.shape[-1]
    f32 = jnp.float32

    def stacked_rows(ref, kh):
        # Rows kh .. kh+H-1 of every item in the block, stacked along M, so each band
        # RHS is pushed once per NB*H LHS rows (better MXU fill when NB > 1).
        if NB == 1:
            return ref[0, kh:kh + H, :]
        return jnp.concatenate([ref[n, kh:kh + H, :] for n in range(NB)], axis=0)

    # --- conv1 + ReLU: column-upsample & channel-concat are folded into m1 ---
    acc1 = b1_ref[...]                                             # (1, W*Cout) -> broadcasts
    for kh in range(3):
        acc1 = acc1 + jnp.dot(stacked_rows(lhs1_ref, kh), m1_ref[kh],
                              preferred_element_type=f32)
    h1 = jnp.maximum(acc1, 0.0)                                    # (NB*H, W*Cout) f32

    # --- stash conv1 output (bf16) in a row-padded scratch; halo rows zeroed ---
    zrow = jnp.zeros((1, WCo), h1p_ref.dtype)
    for n in range(NB):
        h1p_ref[n, 0:1, :] = zrow
        h1p_ref[n, Hp2 - 1:Hp2, :] = zrow
        h1p_ref[n, 1:H + 1, :] = h1[n * H:(n + 1) * H, :].astype(h1p_ref.dtype)

    # --- conv2 + ReLU ---
    acc2 = b2_ref[...]
    for kh in range(3):
        acc2 = acc2 + jnp.dot(stacked_rows(h1p_ref, kh), m2_ref[kh],
                              preferred_element_type=f32)
    out = jnp.maximum(acc2, 0.0)
    for n in range(NB):
        o_ref[n, :, :] = out[n * H:(n + 1) * H, :].astype(o_ref.dtype)   # lane-dense store


# ---------------------------------------------------------------------------
# unetUp.forward wrapper (NCHW in / NCHW out, matching the PyTorch module).
# ---------------------------------------------------------------------------
@jax.jit
def unet_up_forward(inputs0_nchw, skip_nchw, params):
    N, C_up, Hin, Win = inputs0_nchw.shape
    _, C_skip, H, W = skip_nchw.shape          # H = 2*Hin, W = 2*Win
    WCo = params["M2"].shape[-1]
    Cout = WCo // W
    K1 = Win * C_up + W * C_skip
    NB = _pick_nb(N)

    # NCHW -> NHWC -> (H, W*C) lane-dense layout (pure layout glue, no compute).
    x2d = jnp.transpose(inputs0_nchw, (0, 2, 3, 1)).reshape(N, Hin, Win * C_up)
    s2d = jnp.transpose(skip_nchw, (0, 2, 3, 1)).reshape(N, H, W * C_skip)

    # Row (H) upsample with the zero halo folded into A_pad; the column (W) upsample is
    # folded into conv1's weights.  Skip is row-padded and both halves are concatenated
    # along lanes here, so the channel concat never materializes in the kernel.
    up_rows = jnp.einsum('rh,nhk->nrk', params["A_pad"], x2d)      # (N, H+2, Win*C_up)
    sk_rows = jnp.pad(s2d, ((0, 0), (1, 1), (0, 0)))               # (N, H+2, W*C_skip)
    lhs1 = jnp.concatenate([up_rows, sk_rows], axis=-1).astype(jnp.bfloat16)

    out2d = pl.pallas_call(
        _unet_up_kernel,
        out_shape=jax.ShapeDtypeStruct((N, H, WCo), inputs0_nchw.dtype),
        grid=(N // NB,),
        in_specs=[
            pl.BlockSpec((NB, H + 2, K1), lambda n: (n, 0, 0)),
            pl.BlockSpec((3, K1, WCo), lambda n: (0, 0, 0)),
            pl.BlockSpec((3, WCo, WCo), lambda n: (0, 0, 0)),
            pl.BlockSpec((1, WCo), lambda n: (0, 0)),
            pl.BlockSpec((1, WCo), lambda n: (0, 0)),
        ],
        out_specs=pl.BlockSpec((NB, H, WCo), lambda n: (n, 0, 0)),
        scratch_shapes=[pltpu.VMEM((NB, H + 2, WCo), jnp.bfloat16)],
        compiler_params=pltpu.CompilerParams(dimension_semantics=("parallel",)),
    )(lhs1, params["M1"], params["M2"], params["b1"], params["b2"])

    out = out2d.reshape(N, H, W, Cout)
    return jnp.transpose(out, (0, 3, 1, 2))                        # back to NCHW


# ---------------------------------------------------------------------------
# Pure-JAX reference (XLA conv / einsum, all-f32) used only for correctness checking.
# ---------------------------------------------------------------------------
def _ref_forward(inputs0_nchw, skip_nchw, w1, b1, w2, b2):
    x = jnp.transpose(inputs0_nchw, (0, 2, 3, 1))
    s = jnp.transpose(skip_nchw, (0, 2, 3, 1))
    N, H, W, C = x.shape
    A = _interp_matrix(2 * H, H)
    B = _interp_matrix(2 * W, W)
    up = jnp.einsum('ih,jw,nhwc->nijc', A, B, x)
    cat = jnp.concatenate([up, s], axis=-1)

    def conv_relu(z, w, b):
        y = jax.lax.conv_general_dilated(
            z, w, (1, 1), 'SAME',
            dimension_numbers=('NHWC', 'HWIO', 'NHWC'))
        return jax.nn.relu(y + b)

    h = conv_relu(cat, w1, b1)
    h = conv_relu(h, w2, b2)
    return jnp.transpose(h, (0, 3, 1, 2))


if __name__ == "__main__":
    key = jax.random.PRNGKey(0)
    k1, k2, k3, k4, k5, k6 = jax.random.split(key, 6)

    # unetUp(in_size_up=8, in_size=4, out_size=8, is_deconv=False, n_concat=2)
    N, C_up, Hs, Ws = 2, 8, 8, 8
    C_skip, C_out = 4, 8
    Cin1 = C_up + (2 - 1) * C_skip                  # 12

    inputs0 = jax.random.normal(k1, (N, C_up, Hs, Ws), jnp.float32)          # NCHW
    skip = jax.random.normal(k2, (N, C_skip, 2 * Hs, 2 * Ws), jnp.float32)   # NCHW

    # deterministic kaiming-style init (HWIO weights)
    w1 = jax.random.normal(k3, (3, 3, Cin1, C_out), jnp.float32) * (2.0 / (9 * Cin1)) ** 0.5
    b1 = 0.01 * jax.random.normal(k4, (C_out,), jnp.float32)
    w2 = jax.random.normal(k5, (3, 3, C_out, C_out), jnp.float32) * (2.0 / (9 * C_out)) ** 0.5
    b2 = 0.01 * jax.random.normal(k6, (C_out,), jnp.float32)

    params = prepare_unet_up_params(w1, b1, w2, b2, C_up, Hs, Ws)   # built once per weight set
    out = unet_up_forward(inputs0, skip, params)
    out = jax.block_until_ready(out)

    assert out.shape == (N, C_out, 2 * Hs, 2 * Ws), out.shape
    ref = _ref_forward(inputs0, skip, w1, b1, w2, b2)
    err = float(jnp.max(jnp.abs(out - ref)))
    # bf16 matmul operands (f32 accumulation) vs f32 reference -> relaxed tolerance.
    assert err < 8e-2, err

    print("KERNEL_OK")
</pallas_src>

<mosaic_0001>
module attributes {stable_mosaic.version = 11 : i64} {
  func.func @_unet_up_kernel(%arg0: i32, %arg1: memref<1x18x128xbf16, #tpu.memory_space<vmem>>, %arg2: memref<3x128x128xbf16, #tpu.memory_space<vmem>>, %arg3: memref<3x128x128xbf16, #tpu.memory_space<vmem>>, %arg4: memref<1x128xf32, #tpu.memory_space<vmem>>, %arg5: memref<1x128xf32, #tpu.memory_space<vmem>>, %arg6: memref<1x16x128xf32, #tpu.memory_space<vmem>>, %arg7: memref<1x18x128xbf16, #tpu.memory_space<vmem>>) attributes {dimension_semantics = [#tpu.dimension_semantics<parallel>], iteration_bounds = array<i64: 2>, scalar_prefetch = 0 : i64, scratch_operands = 1 : i64, tpu.core_type = #tpu.core_type<tc>, window_params = [{transform_indices = @transform_0, window_bounds = array<i64: 1, 18, 128>}, {pipeline_mode = #tpu.pipeline_mode<synchronous>, transform_indices = @transform_1, window_bounds = array<i64: 3, 128, 128>}, {pipeline_mode = #tpu.pipeline_mode<synchronous>, transform_indices = @transform_2, window_bounds = array<i64: 3, 128, 128>}, {pipeline_mode = #tpu.pipeline_mode<synchronous>, transform_indices = @transform_3, window_bounds = array<i64: 1, 128>}, {pipeline_mode = #tpu.pipeline_mode<synchronous>, transform_indices = @transform_4, window_bounds = array<i64: 1, 128>}, {transform_indices = @transform_5, window_bounds = array<i64: 1, 16, 128>}]} {
    %c0 = arith.constant 0 : index
    %c0_0 = arith.constant 0 : index
    %0 = vector.load %arg4[%c0, %c0_0] : memref<1x128xf32, #tpu.memory_space<vmem>>, vector<1x128xf32>
    %c0_1 = arith.constant 0 : index
    %c0_2 = arith.constant 0 : index
    %c0_3 = arith.constant 0 : index
    %1 = vector.load %arg1[%c0_1, %c0_2, %c0_3] : memref<1x18x128xbf16, #tpu.memory_space<vmem>>, vector<1x16x128xbf16>
    %2 = vector.shape_cast %1 : vector<1x16x128xbf16> to vector<16x128xbf16>
    %c0_4 = arith.constant 0 : index
    %c0_5 = arith.constant 0 : index
    %c0_6 = arith.constant 0 : index
    %3 = vector.load %arg2[%c0_4, %c0_5, %c0_6] : memref<3x128x128xbf16, #tpu.memory_space<vmem>>, vector<1x128x128xbf16>
    %4 = vector.shape_cast %3 : vector<1x128x128xbf16> to vector<128x128xbf16>
    %cst = arith.constant dense<0.000000e+00> : vector<16x128xf32>
    %5 = tpu.matmul %2, %4, %cst {dimension_numbers = #tpu.dot_dimension_numbers<[1], [0], [0], [1], [0, 0, 1, 1], [], []>} : vector<16x128xbf16>, vector<128x128xbf16>, vector<16x128xf32> -> vector<16x128xf32>
    %6 = vector.broadcast %0 : vector<1x128xf32> to vector<16x128xf32>
    %7 = arith.addf %6, %5 : vector<16x128xf32>
    %c0_7 = arith.constant 0 : index
    %c1 = arith.constant 1 : index
    %c0_8 = arith.constant 0 : index
    %8 = vector.load %arg1[%c0_7, %c1, %c0_8] : memref<1x18x128xbf16, #tpu.memory_space<vmem>>, vector<1x16x128xbf16>
    %9 = vector.shape_cast %8 : vector<1x16x128xbf16> to vector<16x128xbf16>
    %c1_9 = arith.constant 1 : index
    %c0_10 = arith.constant 0 : index
    %c0_11 = arith.constant 0 : index
    %10 = vector.load %arg2[%c1_9, %c0_10, %c0_11] : memref<3x128x128xbf16, #tpu.memory_space<vmem>>, vector<1x128x128xbf16>
    %11 = vector.shape_cast %10 : vector<1x128x128xbf16> to vector<128x128xbf16>
    %cst_12 = arith.constant dense<0.000000e+00> : vector<16x128xf32>
    %12 = tpu.matmul %9, %11, %cst_12 {dimension_numbers = #tpu.dot_dimension_numbers<[1], [0], [0], [1], [0, 0, 1, 1], [], []>} : vector<16x128xbf16>, vector<128x128xbf16>, vector<16x128xf32> -> vector<16x128xf32>
    %13 = arith.addf %7, %12 : vector<16x128xf32>
    %c0_13 = arith.constant 0 : index
    %c2 = arith.constant 2 : index
    %c0_14 = arith.constant 0 : index
    %14 = vector.load %arg1[%c0_13, %c2, %c0_14] : memref<1x18x128xbf16, #tpu.memory_space<vmem>>, vector<1x16x128xbf16>
    %15 = vector.shape_cast %14 : vector<1x16x128xbf16> to vector<16x128xbf16>
    %c2_15 = arith.constant 2 : index
    %c0_16 = arith.constant 0 : index
    %c0_17 = arith.constant 0 : index
    %16 = vector.load %arg2[%c2_15, %c0_16, %c0_17] : memref<3x128x128xbf16, #tpu.memory_space<vmem>>, vector<1x128x128xbf16>
    %17 = vector.shape_cast %16 : vector<1x128x128xbf16> to vector<128x128xbf16>
    %cst_18 = arith.constant dense<0.000000e+00> : vector<16x128xf32>
    %18 = tpu.matmul %15, %17, %cst_18 {dimension_numbers = #tpu.dot_dimension_numbers<[1], [0], [0], [1], [0, 0, 1, 1], [], []>} : vector<16x128xbf16>, vector<128x128xbf16>, vector<16x128xf32> -> vector<16x128xf32>
    %19 = arith.addf %13, %18 : vector<16x128xf32>
    %cst_19 = arith.constant 0.000000e+00 : f32
    %20 = vector.broadcast %cst_19 : f32 to vector<16x128xf32>
    %21 = arith.maximumf %19, %20 : vector<16x128xf32>
    %cst_20 = arith.constant 0.000000e+00 : bf16
    %22 = vector.broadcast %cst_20 : bf16 to vector<1x128xbf16>
    %c0_21 = arith.constant 0 : index
    %c0_22 = arith.constant 0 : index
    %c0_23 = arith.constant 0 : index
    %23 = vector.load %arg7[%c0_21, %c0_22, %c0_23] : memref<1x18x128xbf16, #tpu.memory_space<vmem>>, vector<1x1x128xbf16>
    %24 = vector.shape_cast %23 : vector<1x1x128xbf16> to vector<1x128xbf16>
    %25 = vector.shape_cast %22 : vector<1x128xbf16> to vector<1x1x128xbf16>
    tpu.vector_store %arg7[%c0_21, %c0_22, %c0_23], %25 {strides = array<i32>} : memref<1x18x128xbf16, #tpu.memory_space<vmem>>, vector<1x1x128xbf16>,
    %c0_24 = arith.constant 0 : index
    %c17 = arith.constant 17 : index
    %c0_25 = arith.constant 0 : index
    %26 = vector.load %arg7[%c0_24, %c17, %c0_25] : memref<1x18x128xbf16, #tpu.memory_space<vmem>>, vector<1x1x128xbf16>
    %27 = vector.shape_cast %26 : vector<1x1x128xbf16> to vector<1x128xbf16>
    %28 = vector.shape_cast %22 : vector<1x128xbf16> to vector<1x1x128xbf16>
    tpu.vector_store %arg7[%c0_24, %c17, %c0_25], %28 {strides = array<i32>} : memref<1x18x128xbf16, #tpu.memory_space<vmem>>, vector<1x1x128xbf16>,
    %29 = arith.truncf %21 : vector<16x128xf32> to vector<16x128xbf16>
    %c0_26 = arith.constant 0 : index
    %c1_27 = arith.constant 1 : index
    %c0_28 = arith.constant 0 : index
    %30 = vector.load %arg7[%c0_26, %c1_27, %c0_28] : memref<1x18x128xbf16, #tpu.memory_space<vmem>>, vector<1x16x128xbf16>
    %31 = vector.shape_cast %30 : vector<1x16x128xbf16> to vector<16x128xbf16>
    %32 = vector.shape_cast %29 : vector<16x128xbf16> to vector<1x16x128xbf16>
    tpu.vector_store %arg7[%c0_26, %c1_27, %c0_28], %32 {strides = array<i32>} : memref<1x18x128xbf16, #tpu.memory_space<vmem>>, vector<1x16x128xbf16>,
    %c0_29 = arith.constant 0 : index
    %c0_30 = arith.constant 0 : index
    %33 = vector.load %arg5[%c0_29, %c0_30] : memref<1x128xf32, #tpu.memory_space<vmem>>, vector<1x128xf32>
    %c0_31 = arith.constant 0 : index
    %c0_32 = arith.constant 0 : index
    %c0_33 = arith.constant 0 : index
    %34 = vector.load %arg7[%c0_31, %c0_32, %c0_33] : memref<1x18x128xbf16, #tpu.memory_space<vmem>>, vector<1x16x128xbf16>
    %35 = vector.shape_cast %34 : vector<1x16x128xbf16> to vector<16x128xbf16>
    %c0_34 = arith.constant 0 : index
    %c0_35 = arith.constant 0 : index
    %c0_36 = arith.constant 0 : index
    %36 = vector.load %arg3[%c0_34, %c0_35, %c0_36] : memref<3x128x128xbf16, #tpu.memory_space<vmem>>, vector<1x128x128xbf16>
    %37 = vector.shape_cast %36 : vector<1x128x128xbf16> to vector<128x128xbf16>
    %cst_37 = arith.constant dense<0.000000e+00> : vector<16x128xf32>
    %38 = tpu.matmul %35, %37, %cst_37 {dimension_numbers = #tpu.dot_dimension_numbers<[1], [0], [0], [1], [0, 0, 1, 1], [], []>} : vector<16x128xbf16>, vector<128x128xbf16>, vector<16x128xf32> -> vector<16x128xf32>
    %39 = vector.broadcast %33 : vector<1x128xf32> to vector<16x128xf32>
    %40 = arith.addf %39, %38 : vector<16x128xf32>
    %c0_38 = arith.constant 0 : index
    %c1_39 = arith.constant 1 : index
    %c0_40 = arith.constant 0 : index
    %41 = vector.load %arg7[%c0_38, %c1_39, %c0_40] : memref<1x18x128xbf16, #tpu.memory_space<vmem>>, vector<1x16x128xbf16>
    %42 = vector.shape_cast %41 : vector<1x16x128xbf16> to vector<16x128xbf16>
    %c1_41 = arith.constant 1 : index
    %c0_42 = arith.constant 0 : index
    %c0_43 = arith.constant 0 : index
    %43 = vector.load %arg3[%c1_41, %c0_42, %c0_43] : memref<3x128x128xbf16, #tpu.memory_space<vmem>>, vector<1x128x128xbf16>
    %44 = vector.shape_cast %43 : vector<1x128x128xbf16> to vector<128x128xbf16>
    %cst_44 = arith.constant dense<0.000000e+00> : vector<16x128xf32>
    %45 = tpu.matmul %42, %44, %cst_44 {dimension_numbers = #tpu.dot_dimension_numbers<[1], [0], [0], [1], [0, 0, 1, 1], [], []>} : vector<16x128xbf16>, vector<128x128xbf16>, vector<16x128xf32> -> vector<16x128xf32>
    %46 = arith.addf %40, %45 : vector<16x128xf32>
    %c0_45 = arith.constant 0 : index
    %c2_46 = arith.constant 2 : index
    %c0_47 = arith.constant 0 : index
    %47 = vector.load %arg7[%c0_45, %c2_46, %c0_47] : memref<1x18x128xbf16, #tpu.memory_space<vmem>>, vector<1x16x128xbf16>
    %48 = vector.shape_cast %47 : vector<1x16x128xbf16> to vector<16x128xbf16>
    %c2_48 = arith.constant 2 : index
    %c0_49 = arith.constant 0 : index
    %c0_50 = arith.constant 0 : index
    %49 = vector.load %arg3[%c2_48, %c0_49, %c0_50] : memref<3x128x128xbf16, #tpu.memory_space<vmem>>, vector<1x128x128xbf16>
    %50 = vector.shape_cast %49 : vector<1x128x128xbf16> to vector<128x128xbf16>
    %cst_51 = arith.constant dense<0.000000e+00> : vector<16x128xf32>
    %51 = tpu.matmul %48, %50, %cst_51 {dimension_numbers = #tpu.dot_dimension_numbers<[1], [0], [0], [1], [0, 0, 1, 1], [], []>} : vector<16x128xbf16>, vector<128x128xbf16>, vector<16x128xf32> -> vector<16x128xf32>
    %52 = arith.addf %46, %51 : vector<16x128xf32>
    %cst_52 = arith.constant 0.000000e+00 : f32
    %53 = vector.broadcast %cst_52 : f32 to vector<16x128xf32>
    %54 = arith.maximumf %52, %53 : vector<16x128xf32>
    %c0_53 = arith.constant 0 : index
    %c0_54 = arith.constant 0 : index
    %c0_55 = arith.constant 0 : index
    %55 = vector.load %arg6[%c0_53, %c0_54, %c0_55] : memref<1x16x128xf32, #tpu.memory_space<vmem>>, vector<1x16x128xf32>
    %56 = vector.shape_cast %55 : vector<1x16x128xf32> to vector<16x128xf32>
    %57 = vector.shape_cast %54 : vector<16x128xf32> to vector<1x16x128xf32>
    tpu.vector_store %arg6[%c0_53, %c0_54, %c0_55], %57 {strides = array<i32>} : memref<1x16x128xf32, #tpu.memory_space<vmem>>, vector<1x16x128xf32>,
    return
  }
  func.func @transform_0(%arg0: i32) -> (i32, i32, i32) {
    %c0_i32 = arith.constant 0 : i32
    %c0_i32_0 = arith.constant 0 : i32
    %c0_i32_1 = arith.constant 0 : i32
    return %arg0, %c0_i32, %c0_i32_0 : i32, i32, i32
  }
  func.func @transform_1(%arg0: i32) -> (i32, i32, i32) {
    %c0_i32 = arith.constant 0 : i32
    %c0_i32_0 = arith.constant 0 : i32
    %c0_i32_1 = arith.constant 0 : i32
    %c0_i32_2 = arith.constant 0 : i32
    return %c0_i32, %c0_i32_0, %c0_i32_1 : i32, i32, i32
  }
  func.func @transform_2(%arg0: i32) -> (i32, i32, i32) {
    %c0_i32 = arith.constant 0 : i32
    %c0_i32_0 = arith.constant 0 : i32
    %c0_i32_1 = arith.constant 0 : i32
    %c0_i32_2 = arith.constant 0 : i32
    return %c0_i32, %c0_i32_0, %c0_i32_1 : i32, i32, i32
  }
  func.func @transform_3(%arg0: i32) -> (i32, i32) {
    %c0_i32 = arith.constant 0 : i32
    %c0_i32_0 = arith.constant 0 : i32
    %c0_i32_1 = arith.constant 0 : i32
    return %c0_i32, %c0_i32_0 : i32, i32
  }
  func.func @transform_4(%arg0: i32) -> (i32, i32) {
    %c0_i32 = arith.constant 0 : i32
    %c0_i32_0 = arith.constant 0 : i32
    %c0_i32_1 = arith.constant 0 : i32
    return %c0_i32, %c0_i32_0 : i32, i32
  }
  func.func @transform_5(%arg0: i32) -> (i32, i32, i32) {
    %c0_i32 = arith.constant 0 : i32
    %c0_i32_0 = arith.constant 0 : i32
    %c0_i32_1 = arith.constant 0 : i32
    return %arg0, %c0_i32, %c0_i32_0 : i32, i32, i32
  }
}

</mosaic_0001>

<llo_original>
// kernel: unet_up_forward.1
$region0: #{unet_up_forward.1}
  #allocation0 [shape = 'u32[]', space=smem, size = 0x4, offset = 0x4, fixed_abs, tag = 'smem constant byte address 0x4 - core index']
  #allocation1 [shape = 'u32[72,128]{1,0:T(1,128)}', space=vmem, size = 0x9000, scoped, tag = 'internal scratch']
  #allocation2 [shape = 'bf16[1,18,128]{2,1,0:T(8,128)(2,1)}', space=vmem, size = 0x1800, scoped, tag = 'scratch operand']
  %s0 = inlined_call_operand.vmem [shape: bf16[2,18,128], index: 0, kind: input, shape index: {}]
  %s1 = inlined_call_operand.vmem [shape: bf16[3,128,128], index: 1, kind: input, shape index: {}]
  %s2 = inlined_call_operand.vmem [shape: bf16[3,128,128], index: 2, kind: input, shape index: {}]
  %s3 = inlined_call_operand.vmem [shape: f32[1,128], index: 3, kind: input, shape index: {}]
  %s4 = inlined_call_operand.vmem [shape: f32[1,128], index: 4, kind: input, shape index: {}]
  %s5 = inlined_call_operand.vmem [shape: f32[2,16,128], index: 5, kind: output, shape index: {}]
  %s6 = sld [smem:[#allocation0]]
  $region53: #{unet_up_forward.1} parent=0
    _
  %s8 = ssub.s32 1, %s6
  %s9 = scalar_select 0, %s8, %s6
  loop: start=0, step=1, limit=4
  $region2: #{unet_up_forward.1} parent=0 // loop_pre_header
    _
  $region3: #{unet_up_forward.1} parent=0 // loop_header
    %s11 = sphi 0, %s15
    %p12 = scmp.ge.s32.totalorder %s11, 4
    %s21 = sphi 0, %s23
    %s24 = sphi 0, %s21
    %s25 = sphi 0, %s24
    %s41 = sphi 0, %s25
    %s45 = sphi 0, %s45
    %s47 = sphi 0, %s45
    %s48 = sphi 0, %s47
    %s62 = sphi 0, %s48
    %s66 = sphi 0, %s66
    %s68 = sphi 0, %s66
    %s69 = sphi 0, %s68
    %s83 = sphi 0, %s69
    %s87 = sphi 0, %s87
    %s89 = sphi 0, %s87
    %s90 = sphi 0, %s89
    %s104 = sphi 0, %s90
    %s108 = sphi 0, %s108
    %s110 = sphi 0, %s108
    %s111 = sphi 0, %s110
    %s125 = sphi 0, %s111
    %s131 = sphi 0, %s133
    %s134 = sphi 0, %s131
    %s135 = sphi 0, %s134
    %s151 = sphi 0, %s135
  $region4: #{unet_up_forward.1} parent=0 // loop_header_branch
    %14 = sbr.rel (%p12) target = $region8
  $region5: #{unet_up_forward.1} parent=0 // loop_body
    %s16 = ssub.s32 %s11, 1
    %s17 = ssub.s32 %s11, 2
    %s18 = sadd.s32 %s11, 1
    %s19 = ssub.s32 %s11, %s18
    %p20 = scmp.eq.s32.totalorder %s19, 0
    %s22 = sadd.s32 %s21, 1
    %s23 = scalar_select %p20, %s21, %s22
    %p26 = pneg %p20
    %p27 = scmp.eq.s32.totalorder %s11, 1
    %p28 = por %p26, %p27
    %p29 = scmp.ne.s32.totalorder %s21, %s24
    %p30 = scmp.eq.s32.totalorder %s11, 0
    %p31 = por %p29, %p30
    %p32 = scmp.ne.s32.totalorder %s21, %s24
    %p33 = scmp.eq.s32.totalorder %s16, 1
    %p34 = por %p32, %p33
    %p35 = scmp.ne.s32.totalorder %s24, %s25
    %p36 = scmp.eq.s32.totalorder %s16, 0
    %p37 = por %p35, %p36
    %p38 = scmp.ne.s32.totalorder %s24, %s25
    %p39 = scmp.eq.s32.totalorder %s17, 1
    %p40 = por %p38, %p39
    %p42 = scmp.ne.s32.totalorder %s25, %s41
    %p43 = scmp.eq.s32.totalorder %s17, 0
    %p44 = por %p42, %p43
    %s46 = sadd.s32 %s45, 1
    %p49 = scmp.eq.s32.totalorder %s11, 1
    %p50 = scmp.ne.s32.totalorder %s45, %s47
    %p51 = scmp.eq.s32.totalorder %s11, 0
    %p52 = por %p50, %p51
    %p53 = scmp.ne.s32.totalorder %s45, %s47
    %p54 = scmp.eq.s32.totalorder %s16, 1
    %p55 = por %p53, %p54
    %p56 = scmp.ne.s32.totalorder %s47, %s48
    %p57 = scmp.eq.s32.totalorder %s16, 0
    %p58 = por %p56, %p57
    %p59 = scmp.ne.s32.totalorder %s47, %s48
    %p60 = scmp.eq.s32.totalorder %s17, 1
    %p61 = por %p59, %p60
    %p63 = scmp.ne.s32.totalorder %s48, %s62
    %p64 = scmp.eq.s32.totalorder %s17, 0
    %p65 = por %p63, %p64
    %s67 = sadd.s32 %s66, 1
    %p70 = scmp.eq.s32.totalorder %s11, 1
    %p71 = scmp.ne.s32.totalorder %s66, %s68
    %p72 = scmp.eq.s32.totalorder %s11, 0
    %p73 = por %p71, %p72
    %p74 = scmp.ne.s32.totalorder %s66, %s68
    %p75 = scmp.eq.s32.totalorder %s16, 1
    %p76 = por %p74, %p75
    %p77 = scmp.ne.s32.totalorder %s68, %s69
    %p78 = scmp.eq.s32.totalorder %s16, 0
    %p79 = por %p77, %p78
    %p80 = scmp.ne.s32.totalorder %s68, %s69
    %p81 = scmp.eq.s32.totalorder %s17, 1
    %p82 = por %p80, %p81
    %p84 = scmp.ne.s32.totalorder %s69, %s83
    %p85 = scmp.eq.s32.totalorder %s17, 0
    %p86 = por %p84, %p85
    %s88 = sadd.s32 %s87, 1
    %p91 = scmp.eq.s32.totalorder %s11, 1
    %p92 = scmp.ne.s32.totalorder %s87, %s89
    %p93 = scmp.eq.s32.totalorder %s11, 0
    %p94 = por %p92, %p93
    %p95 = scmp.ne.s32.totalorder %s87, %s89
    %p96 = scmp.eq.s32.totalorder %s16, 1
    %p97 = por %p95, %p96
    %p98 = scmp.ne.s32.totalorder %s89, %s90
    %p99 = scmp.eq.s32.totalorder %s16, 0
    %p100 = por %p98, %p99
    %p101 = scmp.ne.s32.totalorder %s89, %s90
    %p102 = scmp.eq.s32.totalorder %s17, 1
    %p103 = por %p101, %p102
    %p105 = scmp.ne.s32.totalorder %s90, %s104
    %p106 = scmp.eq.s32.totalorder %s17, 0
    %p107 = por %p105, %p106
    %s109 = sadd.s32 %s108, 1
    %p112 = scmp.eq.s32.totalorder %s11, 1
    %p113 = scmp.ne.s32.totalorder %s108, %s110
    %p114 = scmp.eq.s32.totalorder %s11, 0
    %p115 = por %p113, %p114
    %p116 = scmp.ne.s32.totalorder %s108, %s110
    %p117 = scmp.eq.s32.totalorder %s16, 1
    %p118 = por %p116, %p117
    %p119 = scmp.ne.s32.totalorder %s110, %s111
    %p120 = scmp.eq.s32.totalorder %s16, 0
    %p121 = por %p119, %p120
    %p122 = scmp.ne.s32.totalorder %s110, %s111
    %p123 = scmp.eq.s32.totalorder %s17, 1
    %p124 = por %p122, %p123
    %p126 = scmp.ne.s32.totalorder %s111, %s125
    %p127 = scmp.eq.s32.totalorder %s17, 0
    %p128 = por %p126, %p127
    %s129 = ssub.s32 %s11, %s18
    %p130 = scmp.eq.s32.totalorder %s129, 0
    %s132 = sadd.s32 %s131, 1
    %s133 = scalar_select %p130, %s131, %s132
    %p136 = pneg %p130
    %p137 = scmp.eq.s32.totalorder %s11, 1
    %p138 = por %p136, %p137
    %p139 = scmp.ne.s32.totalorder %s131, %s134
    %p140 = scmp.eq.s32.totalorder %s11, 0
    %p141 = por %p139, %p140
    %p142 = scmp.ne.s32.totalorder %s131, %s134
    %p143 = scmp.eq.s32.totalorder %s16, 1
    %p144 = por %p142, %p143
    %p145 = scmp.ne.s32.totalorder %s134, %s135
    %p146 = scmp.eq.s32.totalorder %s16, 0
    %p147 = por %p145, %p146
    %p148 = scmp.ne.s32.totalorder %s134, %s135
    %p149 = scmp.eq.s32.totalorder %s17, 1
    %p150 = por %p148, %p149
    %p152 = scmp.ne.s32.totalorder %s135, %s151
    %p153 = scmp.eq.s32.totalorder %s17, 0
    %p154 = por %p152, %p153
    %p155 = scmp.le.s32.totalorder 1, %s11
    %p156 = scmp.lt.s32.totalorder %s11, 3
    %p157 = pnand %p155, %p156
    %p158 = pneg %p157
    // Predicated region
    $region9: #{unet_up_forward.1} parent=5 // pred_check
      _
    $region10: #{unet_up_forward.1} parent=5 // pred_check_branch
      %160 = sbr.rel (%p157) target = $region12
    $region11: #{unet_up_forward.1} parent=5 // pred_region
      %s161 = ssub.s32 %s11, 1
      // Predicated region
      $region13: #{unet_up_forward.1} parent=11 // pred_check
        %p162 = pneg %p58
      $region14: #{unet_up_forward.1} parent=11 // pred_check_branch
        %164 = sbr.rel (%p162) target = $region16
      $region15: #{unet_up_forward.1} parent=11 // pred_region
        _
      $region16: #{unet_up_forward.1} parent=11 // pred_fallthru
        _
      // Predicated region
      $region17: #{unet_up_forward.1} parent=11 // pred_check
        %p165 = pneg %p79
      $region18: #{unet_up_forward.1} parent=11 // pred_check_branch
        %167 = sbr.rel (%p165) target = $region20
      $region19: #{unet_up_forward.1} parent=11 // pred_region
        _
      $region20: #{unet_up_forward.1} parent=11 // pred_fallthru
        _
      // Predicated region
      $region21: #{unet_up_forward.1} parent=11 // pred_check
        %p168 = pneg %p100
      $region22: #{unet_up_forward.1} parent=11 // pred_check_branch
        %170 = sbr.rel (%p168) target = $region24
      $region23: #{unet_up_forward.1} parent=11 // pred_region
        _
      $region24: #{unet_up_forward.1} parent=11 // pred_fallthru
        _
      // Predicated region
      $region25: #{unet_up_forward.1} parent=11 // pred_check
        %p171 = pneg %p121
      $region26: #{unet_up_forward.1} parent=11 // pred_check_branch
        %173 = sbr.rel (%p171) target = $region28
      $region27: #{unet_up_forward.1} parent=11 // pred_region
        _
      $region28: #{unet_up_forward.1} parent=11 // pred_fallthru
        _
    $region12: #{unet_up_forward.1} parent=5 // pred_fallthru
      _
    %p174 = scmp.lt.s32.totalorder %s11, 2
    // Predicated region
    $region29: #{unet_up_forward.1} parent=5 // pred_check
      %p175 = pneg %p174
    $region30: #{unet_up_forward.1} parent=5 // pred_check_branch
      %177 = sbr.rel (%p175) target = $region32
    $region31: #{unet_up_forward.1} parent=5 // pred_region
      // Predicated region
      $region33: #{unet_up_forward.1} parent=31 // pred_check
        %p178 = pneg %p31
      $region34: #{unet_up_forward.1} parent=31 // pred_check_branch
        %180 = sbr.rel (%p178) target = $region36
      $region35: #{unet_up_forward.1} parent=31 // pred_region
        %p181 = scmp.lt.s32.totalorder %s11, 1
        %s182 = scalar_select %p181, %s11, 1
        %s183 = smul.addr %s182, 3
        %s184 = smul.addr %s183, 4
        %s185 = scalar_lea.vmem %s0, %s184
      $region36: #{unet_up_forward.1} parent=31 // pred_fallthru
        _
    $region32: #{unet_up_forward.1} parent=5 // pred_fallthru
      _
    %p186 = scmp.le.s32.totalorder 1, %s11
    %p187 = scmp.lt.s32.totalorder %s11, 3
    %p188 = pnand %p186, %p187
    %p189 = pneg %p188
    // Predicated region
    $region37: #{unet_up_forward.1} parent=5 // pred_check
      _
    $region38: #{unet_up_forward.1} parent=5 // pred_check_branch
      %191 = sbr.rel (%p188) target = $region40
    $region39: #{unet_up_forward.1} parent=5 // pred_region
      %s192 = ssub.s32 %s11, 1
      %p193 = scmp.lt.s32.totalorder %s16, 1
      %s194 = scalar_select %p193, %s16, 1
      %s195 = smul.addr %s194, 3
      %s196 = smul.addr %s195, 4
      %s197 = scalar_lea.vmem %s0, %s196
      %p198 = pneg %p37
      %p199 = pneg %p34
      %p200 = pneg %p58
      %p201 = pneg %p55
      %p202 = pneg %p79
      %p203 = pneg %p76
      %p204 = pneg %p100
      %p205 = pneg %p97
      %p206 = pneg %p121
      %p207 = pneg %p118
      %p208 = pneg %p147
      %p209 = pneg %p144
      %p210 = scmp.lt.s32.totalorder %s16, 1
      %s211 = scalar_select %p210, %s16, 1
      %s212 = smul.addr %s211, 2
      %s213 = smul.addr %s212, 8
      %s214 = scalar_lea.vmem %s5, %s213
      %p215 = scmp.lt.s32.totalorder %s16, 1
      %s216 = scalar_select %p215, %s16, 1
      %s217 = smul.addr %s216, 3
      %s218 = smul.addr %s217, 4
      %s219 = scalar_lea.vmem %s0, %s218
      %p220 = scmp.lt.s32.totalorder %s16, 1
      %s221 = scalar_select %p220, %s16, 1
      %s222 = smul.addr %s221, 2
      %s223 = smul.addr %s222, 8
      %s224 = scalar_lea.vmem %s5, %s223
      %v226 = vld [vmem:[%s3] sm:$0x1]
      %v227 = vld [vmem:[%s219] sm:$0xf]
      %v228 = vld [vmem:[%s219 + $0x4] sm:$0xf]
      %v229 = vld [vmem:[%s1] sm:$0xf]
      %v230 = vld [vmem:[%s1 + $0x4] sm:$0xf]
      %v231 = vld [vmem:[%s1 + $0x8] sm:$0xf]
      %v232 = vld [vmem:[%s1 + $0xc] sm:$0xf]
      %v233 = vld [vmem:[%s1 + $0x10] sm:$0xf]
      %v234 = vld [vmem:[%s1 + $0x14] sm:$0xf]
      %v235 = vld [vmem:[%s1 + $0x18] sm:$0xf]
      %v236 = vld [vmem:[%s1 + $0x1c] sm:$0xf]
      %v237 = vld [vmem:[%s1 + $0x20] sm:$0xf]
      %v238 = vld [vmem:[%s1 + $0x24] sm:$0xf]
      %v239 = vld [vmem:[%s1 + $0x28] sm:$0xf]
      %v240 = vld [vmem:[%s1 + $0x2c] sm:$0xf]
      %v241 = vld [vmem:[%s1 + $0x30] sm:$0xf]
      %v242 = vld [vmem:[%s1 + $0x34] sm:$0xf]
      %v243 = vld [vmem:[%s1 + $0x38] sm:$0xf]
      %v244 = vld [vmem:[%s1 + $0x3c] sm:$0xf]
      %v247 = vunpack.c.l.b16 %v227
      %v248 = vunpack.c.l.b16 %v228
      %v249 = vpack.c.b16 %v248, %v247
      %v267 = vunpack.c.l.b16 %v229
      %v268 = vunpack.c.l.b16 %v230
      %v269 = vunpack.c.l.b16 %v231
      %v270 = vunpack.c.l.b16 %v232
      %v271 = vunpack.c.l.b16 %v233
      %v272 = vunpack.c.l.b16 %v234
      %v273 = vunpack.c.l.b16 %v235
      %v274 = vunpack.c.l.b16 %v236
      %v275 = vunpack.c.l.b16 %v237
      %v276 = vunpack.c.l.b16 %v238
      %v277 = vunpack.c.l.b16 %v239
      %v278 = vunpack.c.l.b16 %v240
      %v279 = vunpack.c.l.b16 %v241
      %v280 = vunpack.c.l.b16 %v242
      %v281 = vunpack.c.l.b16 %v243
      %v282 = vunpack.c.l.b16 %v244
      %v283 = vpack.c.b16 %v268, %v267
      %v284 = vpack.c.b16 %v270, %v269
      %v285 = vpack.c.b16 %v272, %v271
      %v286 = vpack.c.b16 %v274, %v273
      %v287 = vpack.c.b16 %v276, %v275
      %v288 = vpack.c.b16 %v278, %v277
      %v289 = vpack.c.b16 %v280, %v279
      %v290 = vpack.c.b16 %v282, %v281
      %299 = vmatpush.bf16.msra.mxu0 %v290
      %300 = vmatpush.bf16.msra.mxu0 %v289
      %301 = vmatpush.bf16.msra.mxu0 %v288
      %302 = vmatpush.bf16.msra.mxu0 %v287
      %303 = vmatpush.bf16.msra.mxu0 %v286
      %304 = vmatpush.bf16.msra.mxu0 %v285
      %305 = vmatpush.bf16.msra.mxu0 %v284
      %306 = vmatpush.bf16.msra.mxu0 %v283
      %307 = vmatmul.bf16.gmra.mxu0 %v249
      %v308 = vpop.f32.mrf.mxu0
      %v309 = vadd.f32 0.0, %v308
      %v310 = vpop.f32.mrf.mxu0
      %v311 = vadd.f32 0.0, %v310
      %312 = vdwg.mxu0
      %v314 = vperm.slane %v226, 0
      %v316 = vadd.f32 %v314, %v309
      %v317 = vadd.f32 %v314, %v311
      %v318 = vld [vmem:[%s219] sm:$0xf]
      %v319 = vld [vmem:[%s219 + $0x4] sm:$0xf]
      %v320 = vld [vmem:[%s219 + $0x8] sm:$0x1]
      %s321 = scalar_lea.vmem %s1, 64
      %v322 = vld [vmem:[%s321] sm:$0xf]
      %v323 = vld [vmem:[%s321 + $0x4] sm:$0xf]
      %v324 = vld [vmem:[%s321 + $0x8] sm:$0xf]
      %v325 = vld [vmem:[%s321 + $0xc] sm:$0xf]
      %v326 = vld [vmem:[%s321 + $0x10] sm:$0xf]
      %v327 = vld [vmem:[%s321 + $0x14] sm:$0xf]
      %v328 = vld [vmem:[%s321 + $0x18] sm:$0xf]
      %v329 = vld [vmem:[%s321 + $0x1c] sm:$0xf]
      %v330 = vld [vmem:[%s321 + $0x20] sm:$0xf]
      %v331 = vld [vmem:[%s321 + $0x24] sm:$0xf]
      %v332 = vld [vmem:[%s321 + $0x28] sm:$0xf]
      %v333 = vld [vmem:[%s321 + $0x2c] sm:$0xf]
      %v334 = vld [vmem:[%s321 + $0x30] sm:$0xf]
      %v335 = vld [vmem:[%s321 + $0x34] sm:$0xf]
      %v336 = vld [vmem:[%s321 + $0x38] sm:$0xf]
      %v337 = vld [vmem:[%s321 + $0x3c] sm:$0xf]
      %v341 = vunpack.c.l.b16 %v318
      %v342 = vunpack.c.l.b16 %v319
      %v343 = vunpack.c.l.b16 %v320
      %v344 = vpack.c.b16 %v342, %v341
      %v345 = vpack.c.b16 %v343, %v343
      %vm346 = vsmask.f32 7424
      %v348 = vshrl.u32 %v344, 16
      %v350 = vshll.u32 %v344, 16
      %v352 = vrot.slane %v350, 1
      %v353 = vor.u32 %v348, %v352
      %v355 = vshll.u32 %v345, 16
      %v357 = vrot.slane %v355, 1
      %v358 = vsel %vm346, %v353, %v357
      %v376 = vunpack.c.l.b16 %v322
      %v377 = vunpack.c.l.b16 %v323
      %v378 = vunpack.c.l.b16 %v324
      %v379 = vunpack.c.l.b16 %v325
      %v380 = vunpack.c.l.b16 %v326
      %v381 = vunpack.c.l.b16 %v327
      %v382 = vunpack.c.l.b16 %v328
      %v383 = vunpack.c.l.b16 %v329
      %v384 = vunpack.c.l.b16 %v330
      %v385 = vunpack.c.l.b16 %v331
      %v386 = vunpack.c.l.b16 %v332
      %v387 = vunpack.c.l.b16 %v333
      %v388 = vunpack.c.l.b16 %v334
      %v389 = vunpack.c.l.b16 %v335
      %v390 = vunpack.c.l.b16 %v336
      %v391 = vunpack.c.l.b16 %v337
      %v392 = vpack.c.b16 %v377, %v376
      %v393 = vpack.c.b16 %v379, %v378
      %v394 = vpack.c.b16 %v381, %v380
      %v395 = vpack.c.b16 %v383, %v382
      %v396 = vpack.c.b16 %v385, %v384
      %v397 = vpack.c.b16 %v387, %v386
      %v398 = vpack.c.b16 %v389, %v388
      %v399 = vpack.c.b16 %v391, %v390
      %408 = vmatpush.bf16.msra.mxu0 %v399
      %409 = vmatpush.bf16.msra.mxu0 %v398
      %410 = vmatpush.bf16.msra.mxu0 %v397
      %411 = vmatpush.bf16.msra.mxu0 %v396
      %412 = vmatpush.bf16.msra.mxu0 %v395
      %413 = vmatpush.bf16.msra.mxu0 %v394
      %414 = vmatpush.bf16.msra.mxu0 %v393
      %415 = vmatpush.bf16.msra.mxu0 %v392
      %416 = vmatmul.bf16.gmra.mxu0 %v358
      %v417 = vpop.f32.mrf.mxu0
      %v418 = vadd.f32 0.0, %v417
      %v419 = vpop.f32.mrf.mxu0
      %v420 = vadd.f32 0.0, %v419
      %421 = vdwg.mxu0
      %v422 = vadd.f32 %v316, %v418
      %v423 = vadd.f32 %v317, %v420
      %v424 = vld [vmem:[%s219] sm:$0xe]
      %s425 = scalar_lea.vmem %s1, 128
      %v426 = vld [vmem:[%s425] sm:$0xf]
      %v427 = vld [vmem:[%s425 + $0x4] sm:$0xf]
      %v428 = vld [vmem:[%s425 + $0x8] sm:$0xf]
      %v429 = vld [vmem:[%s425 + $0xc] sm:$0xf]
      %v430 = vld [vmem:[%s425 + $0x10] sm:$0xf]
      %v431 = vld [vmem:[%s425 + $0x14] sm:$0xf]
      %v432 = vld [vmem:[%s425 + $0x18] sm:$0xf]
      %v433 = vld [vmem:[%s425 + $0x1c] sm:$0xf]
      %v434 = vld [vmem:[%s425 + $0x20] sm:$0xf]
      %v435 = vld [vmem:[%s425 + $0x24] sm:$0xf]
      %v436 = vld [vmem:[%s425 + $0x28] sm:$0xf]
      %v437 = vld [vmem:[%s425 + $0x2c] sm:$0xf]
      %v438 = vld [vmem:[%s425 + $0x30] sm:$0xf]
      %v439 = vld [vmem:[%s425 + $0x34] sm:$0xf]
      %v440 = vld [vmem:[%s425 + $0x38] sm:$0xf]
      %v441 = vld [vmem:[%s425 + $0x3c] sm:$0xf]
      %v443 = vunpack.c.l.b16 %v424
      %v444 = vpack.c.b16 %v342, %v443
      %vm445 = vcmask 1046528
      %v446 = vrot.slane %v444, 1
      %v447 = vrot.slane %v345, 1
      %v448 = vsel %vm445, %v446, %v447
      %v466 = vunpack.c.l.b16 %v426
      %v467 = vunpack.c.l.b16 %v427
      %v468 = vunpack.c.l.b16 %v428
      %v469 = vunpack.c.l.b16 %v429
      %v470 = vunpack.c.l.b16 %v430
      %v471 = vunpack.c.l.b16 %v431
      %v472 = vunpack.c.l.b16 %v432
      %v473 = vunpack.c.l.b16 %v433
      %v474 = vunpack.c.l.b16 %v434
      %v475 = vunpack.c.l.b16 %v435
      %v476 = vunpack.c.l.b16 %v436
      %v477 = vunpack.c.l.b16 %v437
      %v478 = vunpack.c.l.b16 %v438
      %v479 = vunpack.c.l.b16 %v439
      %v480 = vunpack.c.l.b16 %v440
      %v481 = vunpack.c.l.b16 %v441
      %v482 = vpack.c.b16 %v467, %v466
      %v483 = vpack.c.b16 %v469, %v468
      %v484 = vpack.c.b16 %v471, %v470
      %v485 = vpack.c.b16 %v473, %v472
      %v486 = vpack.c.b16 %v475, %v474
      %v487 = vpack.c.b16 %v477, %v476
      %v488 = vpack.c.b16 %v479, %v478
      %v489 = vpack.c.b16 %v481, %v480
      %498 = vmatpush.bf16.msra.mxu0 %v489
      %499 = vmatpush.bf16.msra.mxu0 %v488
      %500 = vmatpush.bf16.msra.mxu0 %v487
      %501 = vmatpush.bf16.msra.mxu0 %v486
      %502 = vmatpush.bf16.msra.mxu0 %v485
      %503 = vmatpush.bf16.msra.mxu0 %v484
      %504 = vmatpush.bf16.msra.mxu0 %v483
      %505 = vmatpush.bf16.msra.mxu0 %v482
      %506 = vmatmul.bf16.gmra.mxu0 %v448
      %v507 = vpop.f32.mrf.mxu0
      %v508 = vadd.f32 0.0, %v507
      %v509 = vpop.f32.mrf.mxu0
      %v510 = vadd.f32 0.0, %v509
      %511 = vdwg.mxu0
      %v512 = vadd.f32 %v422, %v508
      %v513 = vadd.f32 %v423, %v510
      %v514 = vmax.f32 %v512, 0.0
      %v515 = vmax.f32 %v513, 0.0
      %vm516 = vcmask 1040384
      %vm517 = vsmask.f32 256
      %vm518 = vmand %vm516, %vm517
      %v519 = vld [vmem:[#allocation2] sm:$0x1]
      %v520 = vsel %vm518, 0, %v519
      %521 = vst [vmem:[#allocation2] sm:$0x1] %v520
      %vm522 = vsmask.f32 7938
      %vm523 = vmand %vm516, %vm522
      %v524 = vld [vmem:[#allocation2 + $0x8] sm:$0x1]
      %v525 = vsel %vm523, 0, %v524
      %526 = vst [vmem:[#allocation2 + $0x8] sm:$0x1] %v525
      %v527 = vpack.c.bf16 %v514, %v514
      %v528 = vpack.c.bf16 %v515, %v515
      %vm529 = vsmask.f32 4368
      %vm530 = vmor %vm517, %vm529
      %v532 = vshrl.u32 %v527, 16
      %v534 = vrot.slane %v532, 7
      %v535 = vshll.u32 %v527, 16
      %v537 = vor.u32 %v534, %v535
      %v538 = vrot.slane %v534, 4
      %v540 = vshrl.u32 %v528, 16
      %v542 = vrot.slane %v540, 7
      %v543 = vshll.u32 %v528, 16
      %v545 = vor.u32 %v542, %v543
      %v546 = vsel %vm530, %v538, %v545
      %v547 = vrot.slane %v542, 4
      %vm551 = vcmask 1043456
      %vm552 = vmand %vm551, %vm522
      %v553 = vld [vmem:[#allocation2] sm:$0xf]
      %v554 = vsel %vm552, %v537, %v553
      %555 = vst [vmem:[#allocation2] sm:$0xf] %v554
      %556 = vst [vmem:[#allocation2 + $0x4] sm:$0xf] %v546
      %v557 = vld [vmem:[#allocation2 + $0x8] sm:$0x1]
      %v558 = vsel %vm518, %v547, %v557
      %559 = vst [vmem:[#allocation2 + $0x8] sm:$0x1] %v558
      %v560 = vld [vmem:[%s4] sm:$0x1]
      %v561 = vld [vmem:[#allocation2] sm:$0xf]
      %v562 = vld [vmem:[#allocation2 + $0x4] sm:$0xf]
      %v563 = vld [vmem:[%s2] sm:$0xf]
      %v564 = vld [vmem:[%s2 + $0x4] sm:$0xf]
      %v565 = vld [vmem:[%s2 + $0x8] sm:$0xf]
      %v566 = vld [vmem:[%s2 + $0xc] sm:$0xf]
      %v567 = vld [vmem:[%s2 + $0x10] sm:$0xf]
      %v568 = vld [vmem:[%s2 + $0x14] sm:$0xf]
      %v569 = vld [vmem:[%s2 + $0x18] sm:$0xf]
      %v570 = vld [vmem:[%s2 + $0x1c] sm:$0xf]
      %v571 = vld [vmem:[%s2 + $0x20] sm:$0xf]
      %v572 = vld [vmem:[%s2 + $0x24] sm:$0xf]
      %v573 = vld [vmem:[%s2 + $0x28] sm:$0xf]
      %v574 = vld [vmem:[%s2 + $0x2c] sm:$0xf]
      %v575 = vld [vmem:[%s2 + $0x30] sm:$0xf]
      %v576 = vld [vmem:[%s2 + $0x34] sm:$0xf]
      %v577 = vld [vmem:[%s2 + $0x38] sm:$0xf]
      %v578 = vld [vmem:[%s2 + $0x3c] sm:$0xf]
      %v581 = vunpack.c.l.b16 %v561
      %v582 = vunpack.c.l.b16 %v562
      %v583 = vpack.c.b16 %v582, %v581
      %v601 = vunpack.c.l.b16 %v563
      %v602 = vunpack.c.l.b16 %v564
      %v603 = vunpack.c.l.b16 %v565
      %v604 = vunpack.c.l.b16 %v566
      %v605 = vunpack.c.l.b16 %v567
      %v606 = vunpack.c.l.b16 %v568
      %v607 = vunpack.c.l.b16 %v569
      %v608 = vunpack.c.l.b16 %v570
      %v609 = vunpack.c.l.b16 %v571
      %v610 = vunpack.c.l.b16 %v572
      %v611 = vunpack.c.l.b16 %v573
      %v612 = vunpack.c.l.b16 %v574
      %v613 = vunpack.c.l.b16 %v575
      %v614 = vunpack.c.l.b16 %v576
      %v615 = vunpack.c.l.b16 %v577
      %v616 = vunpack.c.l.b16 %v578
      %v617 = vpack.c.b16 %v602, %v601
      %v618 = vpack.c.b16 %v604, %v603
      %v619 = vpack.c.b16 %v606, %v605
      %v620 = vpack.c.b16 %v608, %v607
      %v621 = vpack.c.b16 %v610, %v609
      %v622 = vpack.c.b16 %v612, %v611
      %v623 = vpack.c.b16 %v614, %v613
      %v624 = vpack.c.b16 %v616, %v615
      %633 = vmatpush.bf16.msra.mxu0 %v624
      %634 = vmatpush.bf16.msra.mxu0 %v623
      %635 = vmatpush.bf16.msra.mxu0 %v622
      %636 = vmatpush.bf16.msra.mxu0 %v621
      %637 = vmatpush.bf16.msra.mxu0 %v620
      %638 = vmatpush.bf16.msra.mxu0 %v619
      %639 = vmatpush.bf16.msra.mxu0 %v618
      %640 = vmatpush.bf16.msra.mxu0 %v617
      %641 = vmatmul.bf16.gmra.mxu0 %v583
      %v642 = vpop.f32.mrf.mxu0
      %v643 = vadd.f32 0.0, %v642
      %v644 = vpop.f32.mrf.mxu0
      %v645 = vadd.f32 0.0, %v644
      %646 = vdwg.mxu0
      %v648 = vperm.slane %v560, 0
      %v650 = vadd.f32 %v648, %v643
      %v651 = vadd.f32 %v648, %v645
      %v652 = vld [vmem:[#allocation2] sm:$0xf]
      %v653 = vld [vmem:[#allocation2 + $0x4] sm:$0xf]
      %v654 = vld [vmem:[#allocation2 + $0x8] sm:$0x1]
      %s655 = scalar_lea.vmem %s2, 64
      %v656 = vld [vmem:[%s655] sm:$0xf]
      %v657 = vld [vmem:[%s655 + $0x4] sm:$0xf]
      %v658 = vld [vmem:[%s655 + $0x8] sm:$0xf]
      %v659 = vld [vmem:[%s655 + $0xc] sm:$0xf]
      %v660 = vld [vmem:[%s655 + $0x10] sm:$0xf]
      %v661 = vld [vmem:[%s655 + $0x14] sm:$0xf]
      %v662 = vld [vmem:[%s655 + $0x18] sm:$0xf]
      %v663 = vld [vmem:[%s655 + $0x1c] sm:$0xf]
      %v664 = vld [vmem:[%s655 + $0x20] sm:$0xf]
      %v665 = vld [vmem:[%s655 + $0x24] sm:$0xf]
      %v666 = vld [vmem:[%s655 + $0x28] sm:$0xf]
      %v667 = vld [vmem:[%s655 + $0x2c] sm:$0xf]
      %v668 = vld [vmem:[%s655 + $0x30] sm:$0xf]
      %v669 = vld [vmem:[%s655 + $0x34] sm:$0xf]
      %v670 = vld [vmem:[%s655 + $0x38] sm:$0xf]
      %v671 = vld [vmem:[%s655 + $0x3c] sm:$0xf]
      %v675 = vunpack.c.l.b16 %v652
      %v676 = vunpack.c.l.b16 %v653
      %v677 = vunpack.c.l.b16 %v654
      %v678 = vpack.c.b16 %v676, %v675
      %v679 = vpack.c.b16 %v677, %v677
      %v681 = vshrl.u32 %v678, 16
      %v683 = vshll.u32 %v678, 16
      %v685 = vrot.slane %v683, 1
      %v686 = vor.u32 %v681, %v685
      %v688 = vshll.u32 %v679, 16
      %v690 = vrot.slane %v688, 1
      %v691 = vsel %vm346, %v686, %v690
      %v709 = vunpack.c.l.b16 %v656
      %v710 = vunpack.c.l.b16 %v657
      %v711 = vunpack.c.l.b16 %v658
      %v712 = vunpack.c.l.b16 %v659
      %v713 = vunpack.c.l.b16 %v660
      %v714 = vunpack.c.l.b16 %v661
      %v715 = vunpack.c.l.b16 %v662
      %v716 = vunpack.c.l.b16 %v663
      %v717 = vunpack.c.l.b16 %v664
      %v718 = vunpack.c.l.b16 %v665
      %v719 = vunpack.c.l.b16 %v666
      %v720 = vunpack.c.l.b16 %v667
      %v721 = vunpack.c.l.b16 %v668
      %v722 = vunpack.c.l.b16 %v669
      %v723 = vunpack.c.l.b16 %v670
      %v724 = vunpack.c.l.b16 %v671
      %v725 = vpack.c.b16 %v710, %v709
      %v726 = vpack.c.b16 %v712, %v711
      %v727 = vpack.c.b16 %v714, %v713
      %v728 = vpack.c.b16 %v716, %v715
      %v729 = vpack.c.b16 %v718, %v717
      %v730 = vpack.c.b16 %v720, %v719
      %v731 = vpack.c.b16 %v722, %v721
      %v732 = vpack.c.b16 %v724, %v723
      %741 = vmatpush.bf16.msra.mxu0 %v732
      %742 = vmatpush.bf16.msra.mxu0 %v731
      %743 = vmatpush.bf16.msra.mxu0 %v730
      %744 = vmatpush.bf16.msra.mxu0 %v729
      %745 = vmatpush.bf16.msra.mxu0 %v728
      %746 = vmatpush.bf16.msra.mxu0 %v727
      %747 = vmatpush.bf16.msra.mxu0 %v726
      %748 = vmatpush.bf16.msra.mxu0 %v725
      %749 = vmatmul.bf16.gmra.mxu0 %v691
      %v750 = vpop.f32.mrf.mxu0
      %v751 = vadd.f32 0.0, %v750
      %v752 = vpop.f32.mrf.mxu0
      %v753 = vadd.f32 0.0, %v752
      %754 = vdwg.mxu0
      %v755 = vadd.f32 %v650, %v751
      %v756 = vadd.f32 %v651, %v753
      %v757 = vld [vmem:[#allocation2] sm:$0xe]
      %s758 = scalar_lea.vmem %s2, 128
      %v759 = vld [vmem:[%s758] sm:$0xf]
      %v760 = vld [vmem:[%s758 + $0x4] sm:$0xf]
      %v761 = vld [vmem:[%s758 + $0x8] sm:$0xf]
      %v762 = vld [vmem:[%s758 + $0xc] sm:$0xf]
      %v763 = vld [vmem:[%s758 + $0x10] sm:$0xf]
      %v764 = vld [vmem:[%s758 + $0x14] sm:$0xf]
      %v765 = vld [vmem:[%s758 + $0x18] sm:$0xf]
      %v766 = vld [vmem:[%s758 + $0x1c] sm:$0xf]
      %v767 = vld [vmem:[%s758 + $0x20] sm:$0xf]
      %v768 = vld [vmem:[%s758 + $0x24] sm:$0xf]
      %v769 = vld [vmem:[%s758 + $0x28] sm:$0xf]
      %v770 = vld [vmem:[%s758 + $0x2c] sm:$0xf]
      %v771 = vld [vmem:[%s758 + $0x30] sm:$0xf]
      %v772 = vld [vmem:[%s758 + $0x34] sm:$0xf]
      %v773 = vld [vmem:[%s758 + $0x38] sm:$0xf]
      %v774 = vld [vmem:[%s758 + $0x3c] sm:$0xf]
      %v776 = vunpack.c.l.b16 %v757
      %v777 = vpack.c.b16 %v676, %v776
      %v778 = vrot.slane %v777, 1
      %v779 = vrot.slane %v679, 1
      %v780 = vsel %vm445, %v778, %v779
      %v798 = vunpack.c.l.b16 %v759
      %v799 = vunpack.c.l.b16 %v760
      %v800 = vunpack.c.l.b16 %v761
      %v801 = vunpack.c.l.b16 %v762
      %v802 = vunpack.c.l.b16 %v763
      %v803 = vunpack.c.l.b16 %v764
      %v804 = vunpack.c.l.b16 %v765
      %v805 = vunpack.c.l.b16 %v766
      %v806 = vunpack.c.l.b16 %v767
      %v807 = vunpack.c.l.b16 %v768
      %v808 = vunpack.c.l.b16 %v769
      %v809 = vunpack.c.l.b16 %v770
      %v810 = vunpack.c.l.b16 %v771
      %v811 = vunpack.c.l.b16 %v772
      %v812 = vunpack.c.l.b16 %v773
      %v813 = vunpack.c.l.b16 %v774
      %v814 = vpack.c.b16 %v799, %v798
      %v815 = vpack.c.b16 %v801, %v800
      %v816 = vpack.c.b16 %v803, %v802
      %v817 = vpack.c.b16 %v805, %v804
      %v818 = vpack.c.b16 %v807, %v806
      %v819 = vpack.c.b16 %v809, %v808
      %v820 = vpack.c.b16 %v811, %v810
      %v821 = vpack.c.b16 %v813, %v812
      %830 = vmatpush.bf16.msra.mxu0 %v821
      %831 = vmatpush.bf16.msra.mxu0 %v820
      %832 = vmatpush.bf16.msra.mxu0 %v819
      %833 = vmatpush.bf16.msra.mxu0 %v818
      %834 = vmatpush.bf16.msra.mxu0 %v817
      %835 = vmatpush.bf16.msra.mxu0 %v816
      %836 = vmatpush.bf16.msra.mxu0 %v815
      %837 = vmatpush.bf16.msra.mxu0 %v814
      %838 = vmatmul.bf16.gmra.mxu0 %v780
      %v839 = vpop.f32.mrf.mxu0
      %v840 = vadd.f32 0.0, %v839
      %v841 = vpop.f32.mrf.mxu0
      %v842 = vadd.f32 0.0, %v841
      %843 = vdwg.mxu0
      %v844 = vadd.f32 %v755, %v840
      %v845 = vadd.f32 %v756, %v842
      %v846 = vmax.f32 %v844, 0.0
      %v847 = vmax.f32 %v845, 0.0
      %848 = vst [vmem:[%s224] sm:$0xff] %v846
      %849 = vst [vmem:[%s224 + $0x8] sm:$0xff] %v847
      %p850 = scmp.lt.s32.totalorder %s16, 1
      %s851 = scalar_select %p850, %s16, 1
      %s852 = smul.addr %s851, 2
      %s853 = smul.addr %s852, 8
      %s854 = scalar_lea.vmem %s5, %s853
      // Predicated region
      $region41: #{unet_up_forward.1} parent=39 // pred_check
        %p855 = pneg %p144
      $region42: #{unet_up_forward.1} parent=39 // pred_check_branch
        %857 = sbr.rel (%p855) target = $region44
      $region43: #{unet_up_forward.1} parent=39 // pred_region
        _
      $region44: #{unet_up_forward.1} parent=39 // pred_fallthru
        _
    $region40: #{unet_up_forward.1} parent=5 // pred_fallthru
      _
    %p858 = scmp.le.s32.totalorder 2, %s11
    // Predicated region
    $region45: #{unet_up_forward.1} parent=5 // pred_check
      %p859 = pneg %p858
    $region46: #{unet_up_forward.1} parent=5 // pred_check_branch
      %861 = sbr.rel (%p859) target = $region48
    $region47: #{unet_up_forward.1} parent=5 // pred_region
      %s862 = ssub.s32 %s11, 2
      // Predicated region
      $region49: #{unet_up_forward.1} parent=47 // pred_check
        %p863 = pneg %p150
      $region50: #{unet_up_forward.1} parent=47 // pred_check_branch
        %865 = sbr.rel (%p863) target = $region52
      $region51: #{unet_up_forward.1} parent=47 // pred_region
        %p866 = scmp.lt.s32.totalorder %s17, 1
        %s867 = scalar_select %p866, %s17, 1
        %s868 = smul.addr %s867, 2
        %s869 = smul.addr %s868, 8
        %s870 = scalar_lea.vmem %s5, %s869
      $region52: #{unet_up_forward.1} parent=47 // pred_fallthru
        _
    $region48: #{unet_up_forward.1} parent=5 // pred_fallthru
      _
  $region6: #{unet_up_forward.1} parent=0 // loop_footer
    %s15 = sadd.s32 1, %s11
  $region7: #{unet_up_forward.1} parent=0 // loop_footer_branch
    %10 = sbr.rel target = $region3
  $region8: #{unet_up_forward.1} parent=0 // loop_exit
    _

</llo_original>
